<compile_context>
chip_gen: v7x
topology: tpu7x:2x2x1
jax: 0.10.0
libtpu: 0.0.40
codegen_flags: <defaults>
</compile_context>

<pallas_src>
import functools

import jax
import jax.numpy as jnp
from jax import lax
from jax.experimental import pallas as pl
from jax.experimental.pallas import tpu as pltpu


def _round_up(x, m):
    return (x + m - 1) // m * m


# ---------------------- fused matmul + bias (+ ReLU) kernel --------------------
def _matmul_bias_act_kernel(x_ref, w_ref, b_ref, o_ref, *, apply_relu):
    # x:(TM, Kc)  w:(Kc, Co)  b:(1, Co)  ->  o:(TM, Co)
    acc = jnp.dot(x_ref[...], w_ref[...], preferred_element_type=jnp.float32)
    acc = acc + b_ref[...]
    if apply_relu:
        acc = jnp.maximum(acc, 0.0)
    o_ref[...] = acc.astype(o_ref.dtype)


def matmul_bias_act(x, w, b, *, apply_relu, compute_dtype=jnp.bfloat16, tm_max=512):
    """out = act(x @ w + b), row-tiled Pallas matmul with fused epilogue."""
    m, kdim = x.shape
    kdim2, n = w.shape
    assert kdim == kdim2
    tm = min(tm_max, _round_up(m, 8))          # TM multiple of 8, capped
    m_pad = _round_up(m, tm)
    if m_pad != m:
        x = jnp.pad(x, ((0, m_pad - m), (0, 0)))
    xc = x.astype(compute_dtype)
    wc = w.astype(compute_dtype)
    bc = b.reshape(1, n).astype(jnp.float32)

    out = pl.pallas_call(
        functools.partial(_matmul_bias_act_kernel, apply_relu=apply_relu),
        out_shape=jax.ShapeDtypeStruct((m_pad, n), jnp.float32),
        grid_spec=pltpu.PrefetchScalarGridSpec(
            num_scalar_prefetch=0,
            grid=(m_pad // tm,),
            in_specs=[
                pl.BlockSpec((tm, kdim), lambda i: (i, 0)),   # row tile
                pl.BlockSpec((kdim, n), lambda i: (0, 0)),    # weight: fetched once
                pl.BlockSpec((1, n), lambda i: (0, 0)),       # bias:   fetched once
            ],
            out_specs=pl.BlockSpec((tm, n), lambda i: (i, 0)),
        ),
        compiler_params=pltpu.CompilerParams(
            dimension_semantics=("parallel",),       # megacore-shardable row axis
            vmem_limit_bytes=32 * 1024 * 1024,       # explicit budget (fits v7x 64MiB)
        ),
    )(xc, wc, bc)
    return out[:m] if m_pad != m else out


# ---------------- ConvTranspose2d via sub-pixel (pixel-shuffle) conv ------------
def _convT_phase_weights(w_pt, b, stride, padding):
    """Repack ConvTranspose2d weights (Cin, Cout, K, K) as a stride-1 conv that
    emits all s*s output phases at once:
        W_hat[(ty,tx,ci), (ry,rx,co)] = W[ci,co, (d_max-ty)*s+ry+p, (d_max-tx)*s+rx+p]
    (zero where the kernel index is out of range)."""
    cin, cout, k, _ = w_pt.shape
    s, p = stride, padding
    d_vals = [d for d in range(-(k + s), k + s + 1)
              if any(0 <= d * s + r + p < k for r in range(s))]
    d_min, d_max = min(d_vals), max(d_vals)
    t = d_max - d_min + 1                     # taps per spatial dim (<= ceil(K/s))
    w_hat = jnp.zeros((t, t, cin, s, s, cout), w_pt.dtype)
    for ty in range(t):
        for tx in range(t):
            for ry in range(s):
                for rx in range(s):
                    ky = (d_max - ty) * s + ry + p
                    kx = (d_max - tx) * s + rx + p
                    if 0 <= ky < k and 0 <= kx < k:
                        w_hat = w_hat.at[ty, tx, :, ry, rx, :].set(w_pt[:, :, ky, kx])
    w_mat = w_hat.reshape(t * t * cin, s * s * cout)
    b_mat = jnp.broadcast_to(b.reshape(1, 1, cout), (s, s, cout)).reshape(s * s * cout)
    return w_mat, b_mat, t, d_min, d_max


def conv_transpose2d_pallas(x_nhwc, w_pt, b, *, stride, padding, apply_relu,
                            compute_dtype=jnp.bfloat16):
    """torch.nn.ConvTranspose2d(Cin, Cout, K, stride, padding, bias=True) in NHWC."""
    n, h, w, cin = x_nhwc.shape
    _, cout, k, _ = w_pt.shape
    s, p = stride, padding
    hout = (h - 1) * s - 2 * p + k
    wout = (w - 1) * s - 2 * p + k
    hq = -(-hout // s)                         # phase-grid height  = ceil(hout/s)
    wq = -(-wout // s)

    w_mat, b_mat, t, d_min, d_max = _convT_phase_weights(w_pt, b, s, p)

    # Pad the ORIGINAL map just enough for the t*t tap window (no zero insertion).
    pad_lo = d_max
    pad_hi_h = max(0, hq - d_min - h)
    pad_hi_w = max(0, wq - d_min - w)
    x_pad = jnp.pad(x_nhwc, ((0, 0), (pad_lo, pad_hi_h), (pad_lo, pad_hi_w), (0, 0)))

    # Host-side im2col over the small pre-upsample grid (pure data movement).
    taps = [x_pad[:, ty:ty + hq, tx:tx + wq, :]
            for ty in range(t) for tx in range(t)]
    patches = jnp.concatenate(taps, axis=-1).reshape(n * hq * wq, t * t * cin)

    # Single fused matmul: (M, t*t*Cin) @ (t*t*Cin, s*s*Cout) + bias (+ReLU).
    out_flat = matmul_bias_act(patches, w_mat, b_mat,
                               apply_relu=apply_relu, compute_dtype=compute_dtype)

    # Depth-to-space: interleave the s*s phases, then crop to (Hout, Wout).
    out = out_flat.reshape(n, hq, wq, s, s, cout)
    out = jnp.transpose(out, (0, 1, 3, 2, 4, 5)).reshape(n, hq * s, wq * s, cout)
    return out[:, :hout, :wout, :]


# ------------------------------ Decoder wrapper --------------------------------
def _prep_linear(lin_w, lin_b, c, uh, uw):
    """Fold nn.Unflatten + NCHW->NHWC transpose into a column permutation."""
    din = lin_w.shape[0]
    w_nhwc = lin_w.reshape(din, c, uh, uw).transpose(0, 2, 3, 1).reshape(din, c * uh * uw)
    b_nhwc = lin_b.reshape(c, uh, uw).transpose(1, 2, 0).reshape(-1)
    return w_nhwc, b_nhwc


def init_decoder_params(key, latent_dims, pose_dims, filters, unflat_spatial):
    c_last = filters[-1]
    flat_shape = c_last * unflat_spatial * unflat_spatial
    din = latent_dims + pose_dims
    keys = jax.random.split(key, 16)
    ki = 0

    def nrm(shape):
        nonlocal ki
        v = 0.1 * jax.random.normal(keys[ki], shape, jnp.float32)
        ki += 1
        return v

    params = {
        "lin_w": nrm((din, flat_shape)),        # == torch Linear weight.T
        "lin_b": nrm((flat_shape,)),
        "unflat": (c_last, unflat_spatial, unflat_spatial),
        "convs": [],
    }
    for d in reversed(range(len(filters))):     # ConvT + ReLU stack
        if d == 0:
            continue
        cin, cout_ = filters[d], filters[d - 1]
        padding = 0 if d == len(filters) - 1 else 1
        params["convs"].append(
            dict(w=nrm((cin, cout_, 3, 3)), b=nrm((cout_,)),
                 k=3, stride=2, padding=padding, relu=True))
    # final ConvT(filters[0] -> 1, k=2, s=2, p=1), no ReLU
    params["convs"].append(
        dict(w=nrm((filters[0], 1, 2, 2)), b=nrm((1,)),
             k=2, stride=2, padding=1, relu=False))
    return params


def decoder_forward(params, x, x_pose):
    z = jnp.concatenate([x_pose, x], axis=-1)          # torch.cat([x_pose, x], -1)
    c, uh, uw = params["unflat"]
    w_nhwc, b_nhwc = _prep_linear(params["lin_w"], params["lin_b"], c, uh, uw)
    h = matmul_bias_act(z, w_nhwc, b_nhwc, apply_relu=False,
                        compute_dtype=jnp.float32)     # (N, uh*uw*c), lane-dense
    h = h.reshape(z.shape[0], uh, uw, c)               # directly NHWC
    for layer in params["convs"]:
        h = conv_transpose2d_pallas(
            h, layer["w"], layer["b"],
            stride=layer["stride"], padding=layer["padding"],
            apply_relu=layer["relu"], compute_dtype=jnp.bfloat16)
    return jnp.transpose(h, (0, 3, 1, 2))              # NHWC -> NCHW (N, 1, H, W)


# ------------------------- Pure-JAX reference (for checking) -------------------
def decoder_reference(params, x, x_pose):
    z = jnp.concatenate([x_pose, x], axis=-1)
    h = z @ params["lin_w"] + params["lin_b"]
    c, uh, uw = params["unflat"]
    h = h.reshape(h.shape[0], c, uh, uw)               # NCHW
    for layer in params["convs"]:
        w_pt, bb = layer["w"], layer["b"]
        s, p, k = layer["stride"], layer["padding"], layer["k"]
        rhs = jnp.transpose(w_pt, (1, 0, 2, 3))[:, :, ::-1, ::-1]
        h = lax.conv_general_dilated(
            h, rhs, window_strides=(1, 1),
            padding=[(k - 1 - p, k - 1 - p)] * 2,
            lhs_dilation=(s, s),
            dimension_numbers=("NCHW", "OIHW", "NCHW"))
        h = h + bb.reshape(1, -1, 1, 1)
        if layer["relu"]:
            h = jnp.maximum(h, 0.0)
    return h


if __name__ == "__main__":
    latent_dims, pose_dims = 8, 4
    filters = [4, 8, 16]
    unflat_spatial = 3          # unflat_shape = (16, 3, 3), flat_shape = 144
    n = 2

    key = jax.random.PRNGKey(0)
    kp, kx, kpose = jax.random.split(key, 3)
    params = init_decoder_params(kp, latent_dims, pose_dims, filters, unflat_spatial)
    x = jax.random.normal(kx, (n, latent_dims), jnp.float32)
    x_pose = jax.random.normal(kpose, (n, pose_dims), jnp.float32)

    out = decoder_forward(params, x, x_pose)
    out = jax.block_until_ready(out)

    ref = decoder_reference(params, x, x_pose)
    assert out.shape == ref.shape == (n, 1, 24, 24), out.shape
    max_err = float(jnp.max(jnp.abs(out - ref)))
    # bf16 MXU inputs with f32 accumulation -> loosened tolerance (per review).
    assert jnp.allclose(out, ref, atol=5e-2, rtol=5e-2), max_err
    print("KERNEL_OK")
</pallas_src>

<mosaic_0001>
module attributes {stable_mosaic.version = 11 : i64} {
  func.func @_matmul_bias_act_kernel(%arg0: i32, %arg1: memref<8x12xf32, #tpu.memory_space<vmem>>, %arg2: memref<12x144xf32, #tpu.memory_space<vmem>>, %arg3: memref<1x144xf32, #tpu.memory_space<vmem>>, %arg4: memref<8x144xf32, #tpu.memory_space<vmem>>) attributes {dimension_semantics = [#tpu.dimension_semantics<parallel>], iteration_bounds = array<i64: 1>, scalar_prefetch = 0 : i64, scratch_operands = 0 : i64, tpu.core_type = #tpu.core_type<tc>, window_params = [{transform_indices = @transform_0, window_bounds = array<i64: 8, 12>}, {pipeline_mode = #tpu.pipeline_mode<synchronous>, transform_indices = @transform_1, window_bounds = array<i64: 12, 144>}, {pipeline_mode = #tpu.pipeline_mode<synchronous>, transform_indices = @transform_2, window_bounds = array<i64: 1, 144>}, {transform_indices = @transform_3, window_bounds = array<i64: 8, 144>}]} {
    %c0 = arith.constant 0 : index
    %c0_0 = arith.constant 0 : index
    %0 = vector.load %arg1[%c0, %c0_0] : memref<8x12xf32, #tpu.memory_space<vmem>>, vector<8x12xf32>
    %c0_1 = arith.constant 0 : index
    %c0_2 = arith.constant 0 : index
    %1 = vector.load %arg2[%c0_1, %c0_2] : memref<12x144xf32, #tpu.memory_space<vmem>>, vector<12x144xf32>
    %cst = arith.constant dense<0.000000e+00> : vector<8x144xf32>
    %2 = tpu.matmul %0, %1, %cst {dimension_numbers = #tpu.dot_dimension_numbers<[1], [0], [0], [1], [0, 0, 1, 1], [], []>} : vector<8x12xf32>, vector<12x144xf32>, vector<8x144xf32> -> vector<8x144xf32>
    %c0_3 = arith.constant 0 : index
    %c0_4 = arith.constant 0 : index
    %3 = vector.load %arg3[%c0_3, %c0_4] : memref<1x144xf32, #tpu.memory_space<vmem>>, vector<1x144xf32>
    %4 = vector.broadcast %3 : vector<1x144xf32> to vector<8x144xf32>
    %5 = arith.addf %2, %4 : vector<8x144xf32>
    %c0_5 = arith.constant 0 : index
    %c0_6 = arith.constant 0 : index
    %6 = vector.load %arg4[%c0_5, %c0_6] : memref<8x144xf32, #tpu.memory_space<vmem>>, vector<8x144xf32>
    tpu.vector_store %arg4[%c0_5, %c0_6], %5 {strides = array<i32>} : memref<8x144xf32, #tpu.memory_space<vmem>>, vector<8x144xf32>,
    return
  }
  func.func @transform_0(%arg0: i32) -> (i32, i32) {
    %c0_i32 = arith.constant 0 : i32
    %c0_i32_0 = arith.constant 0 : i32
    return %arg0, %c0_i32 : i32, i32
  }
  func.func @transform_1(%arg0: i32) -> (i32, i32) {
    %c0_i32 = arith.constant 0 : i32
    %c0_i32_0 = arith.constant 0 : i32
    %c0_i32_1 = arith.constant 0 : i32
    return %c0_i32, %c0_i32_0 : i32, i32
  }
  func.func @transform_2(%arg0: i32) -> (i32, i32) {
    %c0_i32 = arith.constant 0 : i32
    %c0_i32_0 = arith.constant 0 : i32
    %c0_i32_1 = arith.constant 0 : i32
    return %c0_i32, %c0_i32_0 : i32, i32
  }
  func.func @transform_3(%arg0: i32) -> (i32, i32) {
    %c0_i32 = arith.constant 0 : i32
    %c0_i32_0 = arith.constant 0 : i32
    return %arg0, %c0_i32 : i32, i32
  }
}

</mosaic_0001>

<llo_original>
// kernel: tpu_custom_call.1
$region0: #{tpu_custom_call.1}
  #allocation0 [shape = 'u32[]', space=smem, size = 0x4, offset = 0x4, fixed_abs, tag = 'smem constant byte address 0x4 - core index']
  #allocation1 [shape = 'u32[144,128]{1,0:T(1,128)}', space=vmem, size = 0x12000, scoped, tag = 'internal scratch']
  %s0 = inlined_call_operand.hbm [shape: f32[8,12], index: 0, kind: input, shape index: {}]
  %s1 = inlined_call_operand.hbm [shape: f32[12,144], index: 1, kind: input, shape index: {}]
  %s2 = inlined_call_operand.vmem [shape: f32[1,144], index: 2, kind: input, shape index: {}]
  %s3 = inlined_call_operand.hbm [shape: f32[8,144], index: 3, kind: output, shape index: {}]
  %s4 = sld [smem:[#allocation0]]
  $region30: #{tpu_custom_call.1} parent=0
    _
  %s6 = ssub.s32 1, %s4
  %s7 = scalar_select 0, %s6, %s4
  $region1: #{tpu_custom_call.1} parent=0
    #allocation2 [shape = 'u8[4096]{0}', space=vmem, size = 0x1000, scoped, tag = 'input window, operand 0, single buffered']
    #allocation3 [shape = 's32[1]{0}', space=sflag, size = 0x4, scoped, tag = 'scoped memory for tpu_custom_call.1']
    #allocation4 [shape = 's32[1]{0}', space=sflag, size = 0x4, scoped, tag = 'scoped memory for tpu_custom_call.1']
    #allocation5 [shape = 'u8[16384]{0}', space=vmem, size = 0x4000, scoped, tag = 'input window, operand 1, single buffered']
    #allocation6 [shape = 's32[1]{0}', space=sflag, size = 0x4, scoped, tag = 'scoped memory for tpu_custom_call.1']
    #allocation7 [shape = 'u8[8192]{0}', space=vmem, size = 0x2000, scoped, tag = 'output window, operand 0, single buffered']
    %8 = vsyncpa [#allocation3], 0
    %9 = vsyncpa [#allocation6], 0
    %10 = vsyncpa [#allocation4], 0
    // Predicated region
    $region2: #{tpu_custom_call.1} parent=1 // pred_check
      _
    $region3: #{tpu_custom_call.1} parent=1 // pred_check_branch
      %12 = sbr.rel (0) target = $region5
    $region4: #{tpu_custom_call.1} parent=1 // pred_region
      %s14 = ssub.s32 128, 128
      %15 = vsyncadd [#allocation3], %s14
      %s17 = sshll.u32 [#allocation2], 4
      %s18 = int_to_ptr.vmem [resolvable:$true] %s17
      %20 = dma.hbm_to_vmem [thread:$0]  %s0, 128, %s18, [#allocation3]
    $region5: #{tpu_custom_call.1} parent=1 // pred_fallthru
      _
    // Predicated region
    $region6: #{tpu_custom_call.1} parent=1 // pred_check
      _
    $region7: #{tpu_custom_call.1} parent=1 // pred_check_branch
      %22 = sbr.rel (0) target = $region9
    $region8: #{tpu_custom_call.1} parent=1 // pred_region
      %s24 = ssub.s32 512, 512
      %25 = vsyncadd [#allocation6], %s24
      %s26 = sshll.u32 [#allocation5], 4
      %s27 = int_to_ptr.vmem [resolvable:$true] %s26
      %32 = dma.hbm_to_vmem [thread:$0]  %s1, 512, %s27, [#allocation6], 256, 256, 16
    $region9: #{tpu_custom_call.1} parent=1 // pred_fallthru
      _
    // Predicated region
    $region10: #{tpu_custom_call.1} parent=1 // pred_check
      _
    $region11: #{tpu_custom_call.1} parent=1 // pred_check_branch
      %34 = sbr.rel (0) target = $region13
    $region12: #{tpu_custom_call.1} parent=1 // pred_region
      _
    $region13: #{tpu_custom_call.1} parent=1 // pred_fallthru
      _
    // Predicated region
    $region14: #{tpu_custom_call.1} parent=1 // pred_check
      _
    $region15: #{tpu_custom_call.1} parent=1 // pred_check_branch
      %36 = sbr.rel (0) target = $region17
    $region16: #{tpu_custom_call.1} parent=1 // pred_region
      %37 = dma.done [#allocation3], 128
    $region17: #{tpu_custom_call.1} parent=1 // pred_fallthru
      _
    // Predicated region
    $region18: #{tpu_custom_call.1} parent=1 // pred_check
      _
    $region19: #{tpu_custom_call.1} parent=1 // pred_check_branch
      %39 = sbr.rel (0) target = $region21
    $region20: #{tpu_custom_call.1} parent=1 // pred_region
      %40 = dma.done [#allocation6], 512
    $region21: #{tpu_custom_call.1} parent=1 // pred_fallthru
      _
    %v41 = vld [vmem:[#allocation2] sm:$0xff]
    %v42 = vld [vmem:[#allocation5] sm:$0xff]
    %v43 = vld [vmem:[#allocation5 + $0x8] sm:$0xff]
    %v44 = vld [vmem:[#allocation5 + $0x10] sm:$0xf]
    %v45 = vld [vmem:[#allocation5 + $0x18] sm:$0xf]
    %v46 = vld [vmem:[%s2] sm:$0x3]
    %v48 = vlaneseq
    %v49 = vshrl.u32 %v48, 7
    %v50 = vsub.s32 0, %v49
    %v51 = vrot.slane %v46, %v50
    %v52 = vlaneseq
    %v53 = vshrl.u32 %v52, 7
    %v54 = vsub.s32 1, %v53
    %v55 = vrot.slane %v46, %v54
    %vm58 = vcmask 97280
    %v60 = vsel %vm58, %v41, 0
    %vm62 = vcmask 1043456
    %v64 = vsel %vm62, %v44, 0
    %v67 = vsel %vm62, %v45, 0
    %69 = vmatprep.subr.mxu0 %v43
    %70 = vmatpush1.msra.mxu0 %v42
    %71 = vmatprep.subr.mxu0 %v67
    %72 = vmatpush1.msra.mxu0 %v64
    %73 = vmatprep.subr.mxu0 0.0
    %74 = vmatpush1.msra.mxu0 0.0
    %75 = vmatprep.subr.mxu0 0.0
    %76 = vmatpush1.msra.mxu0 0.0
    %77 = vmatprep.subr.mxu0 0.0
    %78 = vmatpush1.msra.mxu0 0.0
    %79 = vmatprep.subr.mxu0 0.0
    %80 = vmatpush1.msra.mxu0 0.0
    %81 = vmatprep.subr.mxu0 0.0
    %82 = vmatpush1.msra.mxu0 0.0
    %83 = vmatprep.subr.mxu0 0.0
    %84 = vmatpush1.msra.mxu0 0.0
    %85 = vmatprep.subr.mxu0 0.0
    %86 = vmatpush1.msra.mxu0 0.0
    %87 = vmatprep.subr.mxu0 0.0
    %88 = vmatpush1.msra.mxu0 0.0
    %89 = vmatprep.subr.mxu0 0.0
    %90 = vmatpush1.msra.mxu0 0.0
    %91 = vmatprep.subr.mxu0 0.0
    %92 = vmatpush1.msra.mxu0 0.0
    %93 = vmatprep.subr.mxu0 0.0
    %94 = vmatpush1.msra.mxu0 0.0
    %95 = vmatprep.subr.mxu0 0.0
    %96 = vmatpush1.msra.mxu0 0.0
    %97 = vmatprep.subr.mxu0 0.0
    %98 = vmatpush1.msra.mxu0 0.0
    %99 = vmatprep.subr.mxu0 0.0
    %100 = vmatpush1.msra.mxu0 0.0
    %101 = vmatprep.subr.mxu0 0.0
    %102 = vmatpush1.msra.mxu0 0.0
    %103 = vmatprep.subr.mxu0 0.0
    %104 = vmatpush1.msra.mxu0 0.0
    %105 = vmatprep.subr.mxu0 0.0
    %106 = vmatpush1.msra.mxu0 0.0
    %107 = vmatprep.subr.mxu0 0.0
    %108 = vmatpush1.msra.mxu0 0.0
    %109 = vmatprep.subr.mxu0 0.0
    %110 = vmatpush1.msra.mxu0 0.0
    %111 = vmatprep.subr.mxu0 0.0
    %112 = vmatpush1.msra.mxu0 0.0
    %113 = vmatprep.subr.mxu0 0.0
    %114 = vmatpush1.msra.mxu0 0.0
    %115 = vmatprep.subr.mxu0 0.0
    %116 = vmatpush1.msra.mxu0 0.0
    %117 = vmatprep.subr.mxu0 0.0
    %118 = vmatpush1.msra.mxu0 0.0
    %119 = vmatprep.subr.mxu0 0.0
    %120 = vmatpush1.msra.mxu0 0.0
    %121 = vmatprep.subr.mxu0 0.0
    %122 = vmatpush1.msra.mxu0 0.0
    %123 = vmatprep.subr.mxu0 0.0
    %124 = vmatpush1.msra.mxu0 0.0
    %125 = vmatprep.subr.mxu0 0.0
    %126 = vmatpush1.msra.mxu0 0.0
    %127 = vmatprep.subr.mxu0 0.0
    %128 = vmatpush1.msra.mxu0 0.0
    %129 = vmatprep.subr.mxu0 0.0
    %130 = vmatpush1.msra.mxu0 0.0
    %131 = vmatprep.subr.mxu0 0.0
    %132 = vmatpush1.msra.mxu0 0.0
    %133 = vmatprep.mubr.f32.mxu0 0.0
    %134 = vmatmul.mubr.f32.gmra.mrb[0].mxu0 %v60
    %v135 = vpop.f32.mrb[0].mxu0
    %v136 = vadd.f32 %v51, %v135
    %v137 = vpop.f32.mrb[0].mxu0
    %v138 = vadd.f32 %v55, %v137
    %139 = vdwg.mxu0
    %140 = vst [vmem:[#allocation7] sm:$0xff] %v136
    %vm141 = vcmask 130048
    %142 = vst.msk [vmem:[#allocation7 + $0x8] sm:$0xff] %vm141, %v138
    // Predicated region
    $region22: #{tpu_custom_call.1} parent=1 // pred_check
      _
    $region23: #{tpu_custom_call.1} parent=1 // pred_check_branch
      %144 = sbr.rel (0) target = $region25
    $region24: #{tpu_custom_call.1} parent=1 // pred_region
      %s146 = ssub.s32 256, 256
      %147 = vsyncadd [#allocation4], %s146
      %s149 = sshll.u32 [#allocation7], 4
      %s150 = int_to_ptr.vmem [resolvable:$true] %s149
      %152 = dma.vmem_to_hbm [thread:$0]  %s150, 256, %s3, [#allocation4]
    $region25: #{tpu_custom_call.1} parent=1 // pred_fallthru
      _
    // Predicated region
    $region26: #{tpu_custom_call.1} parent=1 // pred_check
      _
    $region27: #{tpu_custom_call.1} parent=1 // pred_check_branch
      %154 = sbr.rel (0) target = $region29
    $region28: #{tpu_custom_call.1} parent=1 // pred_region
      %155 = dma.done [#allocation4], 256
    $region29: #{tpu_custom_call.1} parent=1 // pred_fallthru
      _
    %156 = vsyncpa [#allocation3], 1
    %157 = vsyncpa [#allocation6], 1
    %158 = vsyncpa [#allocation4], 1

</llo_original>
